<compile_context>
chip_gen: v7x
topology: tpu7x:2x2x1
jax: 0.10.0
libtpu: 0.0.40
codegen_flags: <defaults>
</compile_context>

<pallas_src>
import functools

import jax
import jax.numpy as jnp
from jax.experimental import pallas as pl
from jax.experimental.pallas import tpu as pltpu


def _round_up(x, m):
    return (x + m - 1) // m * m


def spr_kernel(x_ref, w1c_ref, b1_ref, w2t_ref, b2_ref, out_ref, acc_ref):
    """One (B-block, C-block) grid step.

    x_ref   : (TB, 4, TC, HW4)  quadrant-major, lane-dense spatial
    w1c_ref : (4, TC, Cr)       fc1 weights per quadrant (global-mean folded in)
    b1_ref  : (1, Cr)
    w2t_ref : (Cr, C)
    b2_ref  : (1, C)
    out_ref : (TB, C)
    acc_ref : (TB, Cr) f32 scratch, fc1 pre-activation accumulator
    """
    j = pl.program_id(1)

    @pl.when(j == 0)
    def _init():
        acc_ref[...] = jnp.zeros_like(acc_ref)

    hw4 = x_ref.shape[-1]
    inv_hw4 = 1.0 / float(hw4)

    # fc1 partial: sum over the 4 quadrants of (quadrant mean) @ (fc1 weight tile).
    partial = jnp.zeros(acc_ref.shape, dtype=jnp.float32)
    for q in range(4):  # static unroll: 4 lane-reductions + 4 tiny matmuls
        xq = x_ref[:, q, :, :].astype(jnp.float32)       # (TB, TC, HW4)
        qmean = jnp.sum(xq, axis=2) * inv_hw4            # (TB, TC) lane reduce
        wq = w1c_ref[q].astype(jnp.float32)              # (TC, Cr)
        partial = partial + jnp.dot(qmean, wq, preferred_element_type=jnp.float32)
    acc_ref[...] += partial

    @pl.when(j == pl.num_programs(1) - 1)
    def _finalize():
        h = jnp.maximum(acc_ref[...] + b1_ref[...], 0.0)                 # (TB, Cr)
        o = jnp.dot(h, w2t_ref[...].astype(jnp.float32),
                    preferred_element_type=jnp.float32) + b2_ref[...]    # (TB, C)
        out_ref[...] = jax.nn.sigmoid(o).astype(out_ref.dtype)


def _pick_block_c(C, per_c_bytes, budget_bytes):
    """Largest C-tile (divisor of C, multiple of 8 or C itself) fitting budget."""
    cands = [d for d in range(8, C + 1, 8) if C % d == 0]
    if C not in cands:
        cands.append(C)
    cands.sort()
    best = cands[0]
    for tc in cands:
        if tc * per_c_bytes <= budget_bytes:
            best = tc
    return best


def spr_forward(x, w1, b1, w2, b2, *, block_c=None):
    """x: (B, C, H, W); w1: (Cr, 5C); b1: (Cr,); w2: (C, Cr); b2: (C,)."""
    B, C, H, W = x.shape
    Cr = w1.shape[0]
    assert w1.shape == (Cr, 5 * C) and w2.shape == (C, Cr)
    assert H % 2 == 0 and W % 2 == 0
    # TODO(synk): odd H/W needs PyTorch's overlapping adaptive-pool(2) regions.

    h2, w2s = H // 2, W // 2
    hw4 = h2 * w2s
    itemsize = jnp.dtype(x.dtype).itemsize

    # ---- layout plumbing (XLA, outside the kernel) -------------------------
    # (B, C, H, W) -> (B, 4, C, h2*w2), quadrant q = 2*(bottom?) + (right?)
    # which matches PyTorch's AdaptiveAvgPool2d(2) flatten order (c*4 + q).
    xq = (x.reshape(B, C, 2, h2, 2, w2s)
           .transpose(0, 2, 4, 1, 3, 5)
           .reshape(B, 4, C, hw4))

    # ---- fold the global-mean (avg_pool1) branch of fc1 into quadrant weights
    # mean_all = 0.25 * sum_q quadrant_mean_q, so
    #   pooled @ w1.T == sum_q quadrant_mean_q @ (Wq + 0.25 * Wmean)
    # (In production these would be precomputed/cached once outside the hot path.)
    w_mean = w1[:, :C].T.astype(jnp.float32)                      # (C, Cr)
    w_quad = w1[:, C:].astype(jnp.float32)                        # (Cr, 4C), col = c*4+q
    w1c = jnp.stack([w_quad[:, q::4].T for q in range(4)], axis=0)  # (4, C, Cr)
    w1c = w1c + 0.25 * w_mean[None]
    w2t = w2.T.astype(jnp.float32)                                # (Cr, C)
    b1r = b1.reshape(1, Cr).astype(jnp.float32)
    b2r = b2.reshape(1, C).astype(jnp.float32)

    # ---- C tile: double-buffered x block kept small enough for all gens ----
    per_c_bytes = B * 4 * _round_up(hw4, 128) * itemsize          # padded VMEM bytes / channel
    if block_c is None:
        block_c = _pick_block_c(C, per_c_bytes, budget_bytes=4 * 1024 * 1024)
    assert C % block_c == 0 and (block_c % 8 == 0 or block_c == C)
    nc = C // block_c
    grid = (1, nc)                                                # (B-blocks, C-blocks)

    flops = B * C * H * W + 2 * B * 5 * C * Cr + 2 * B * Cr * C
    bytes_accessed = (xq.size * itemsize + w1c.size * 4 + w2t.size * 4
                      + (b1r.size + b2r.size) * 4 + B * C * itemsize)
    cost = pl.CostEstimate(flops=flops, transcendentals=B * C,
                           bytes_accessed=bytes_accessed)

    out = pl.pallas_call(
        spr_kernel,
        out_shape=jax.ShapeDtypeStruct((B, C), x.dtype),
        grid_spec=pltpu.PrefetchScalarGridSpec(
            num_scalar_prefetch=0,
            grid=grid,
            in_specs=[
                pl.BlockSpec((B, 4, block_c, hw4), lambda i, j: (i, 0, j, 0)),
                pl.BlockSpec((4, block_c, Cr), lambda i, j: (0, j, 0)),
                pl.BlockSpec((1, Cr), lambda i, j: (0, 0)),
                pl.BlockSpec((Cr, C), lambda i, j: (0, 0)),
                pl.BlockSpec((1, C), lambda i, j: (0, 0)),
            ],
            out_specs=pl.BlockSpec((B, C), lambda i, j: (i, 0)),
            scratch_shapes=[pltpu.VMEM((B, Cr), jnp.float32)],
        ),
        compiler_params=pltpu.CompilerParams(
            dimension_semantics=("parallel", "arbitrary"),
            vmem_limit_bytes=32 * 1024 * 1024,
        ),
        cost_estimate=cost,
    )(xq, w1c, b1r, w2t, b2r)

    return out.reshape(B, C, 1, 1)


def spr_reference(x, w1, b1, w2, b2):
    """Pure-JAX reference with exact PyTorch semantics (for verification)."""
    B, C, H, W = x.shape
    xf = x.astype(jnp.float32)
    out1 = jnp.mean(xf, axis=(2, 3))                                    # (B, C)
    out2 = jnp.mean(
        xf.reshape(B, C, 2, H // 2, 2, W // 2), axis=(3, 5)
    ).reshape(B, 4 * C)                                                 # c*4+q order
    pooled = jnp.concatenate([out1, out2], axis=1)                      # (B, 5C)
    h = jnp.maximum(pooled @ w1.T + b1, 0.0)
    o = h @ w2.T + b2
    return jax.nn.sigmoid(o).reshape(B, C, 1, 1).astype(x.dtype)


if __name__ == "__main__":
    B, C, H, W = 2, 32, 16, 16
    reduction = 16
    Cr = C // reduction

    key = jax.random.PRNGKey(0)
    kx, k1, k2, k3, k4 = jax.random.split(key, 5)
    x = jax.random.normal(kx, (B, C, H, W), dtype=jnp.float32)
    # Deterministic synthetic parameters (1x1 Conv2d weights flattened to 2D).
    w1 = 0.1 * jax.random.normal(k1, (Cr, 5 * C), dtype=jnp.float32)    # fc1.weight
    b1 = 0.1 * jax.random.normal(k2, (Cr,), dtype=jnp.float32)          # fc1.bias
    w2 = 0.1 * jax.random.normal(k3, (C, Cr), dtype=jnp.float32)        # fc2.weight
    b2 = 0.1 * jax.random.normal(k4, (C,), dtype=jnp.float32)           # fc2.bias

    # block_c=8 -> 4-step C-block grid, exercising the accumulate/finalize path.
    out = spr_forward(x, w1, b1, w2, b2, block_c=8)
    out = jax.block_until_ready(out)

    ref = jax.block_until_ready(spr_reference(x, w1, b1, w2, b2))
    assert out.shape == (B, C, 1, 1)
    assert jnp.allclose(out, ref, atol=2e-5, rtol=1e-5), (
        float(jnp.max(jnp.abs(out - ref))))
    print("KERNEL_OK")
</pallas_src>

<mosaic_0001>
module attributes {stable_mosaic.version = 11 : i64} {
  func.func @spr_kernel(%arg0: i32, %arg1: i32, %arg2: memref<2x4x8x64xf32, #tpu.memory_space<vmem>>, %arg3: memref<4x8x2xf32, #tpu.memory_space<vmem>>, %arg4: memref<1x2xf32, #tpu.memory_space<vmem>>, %arg5: memref<2x32xf32, #tpu.memory_space<vmem>>, %arg6: memref<1x32xf32, #tpu.memory_space<vmem>>, %arg7: memref<2x32xf32, #tpu.memory_space<vmem>>, %arg8: memref<2x2xf32, #tpu.memory_space<vmem>>) attributes {dimension_semantics = [#tpu.dimension_semantics<parallel>, #tpu.dimension_semantics<arbitrary>], iteration_bounds = array<i64: 1, 4>, scalar_prefetch = 0 : i64, scratch_operands = 1 : i64, tpu.core_type = #tpu.core_type<tc>, window_params = [{transform_indices = @transform_0, window_bounds = array<i64: 2, 4, 8, 64>}, {transform_indices = @transform_1, window_bounds = array<i64: 4, 8, 2>}, {pipeline_mode = #tpu.pipeline_mode<synchronous>, transform_indices = @transform_2, window_bounds = array<i64: 1, 2>}, {pipeline_mode = #tpu.pipeline_mode<synchronous>, transform_indices = @transform_3, window_bounds = array<i64: 2, 32>}, {pipeline_mode = #tpu.pipeline_mode<synchronous>, transform_indices = @transform_4, window_bounds = array<i64: 1, 32>}, {transform_indices = @transform_5, window_bounds = array<i64: 2, 32>}]} {
    %c0_i32 = arith.constant 0 : i32
    %0 = arith.cmpi eq, %arg1, %c0_i32 : i32
    %1 = arith.extui %0 : i1 to i32
    %c0_i32_0 = arith.constant 0 : i32
    %2 = arith.cmpi ne, %1, %c0_i32_0 : i32
    scf.if %2 {
      %cst_42 = arith.constant 0.000000e+00 : f32
      %46 = vector.broadcast %cst_42 : f32 to vector<2x2xf32>
      %c0_43 = arith.constant 0 : index
      %c0_44 = arith.constant 0 : index
      %47 = vector.load %arg8[%c0_43, %c0_44] : memref<2x2xf32, #tpu.memory_space<vmem>>, vector<2x2xf32>
      tpu.vector_store %arg8[%c0_43, %c0_44], %46 {strides = array<i32>} : memref<2x2xf32, #tpu.memory_space<vmem>>, vector<2x2xf32>,
    } else {
    }
    %cst = arith.constant 0.000000e+00 : f32
    %3 = vector.broadcast %cst : f32 to vector<2x2xf32>
    %c0 = arith.constant 0 : index
    %c0_1 = arith.constant 0 : index
    %c0_2 = arith.constant 0 : index
    %c0_3 = arith.constant 0 : index
    %4 = vector.load %arg2[%c0, %c0_1, %c0_2, %c0_3] : memref<2x4x8x64xf32, #tpu.memory_space<vmem>>, vector<2x1x8x64xf32>
    %5 = vector.shape_cast %4 : vector<2x1x8x64xf32> to vector<2x8x64xf32>
    %cst_4 = arith.constant dense<0.000000e+00> : vector<2x8xf32>
    %6 = vector.multi_reduction <add>, %5, %cst_4 [2] : vector<2x8x64xf32> to vector<2x8xf32>
    %cst_5 = arith.constant 1.562500e-02 : f32
    %7 = vector.broadcast %cst_5 : f32 to vector<2x8xf32>
    %8 = arith.mulf %6, %7 : vector<2x8xf32>
    %c0_6 = arith.constant 0 : index
    %c0_7 = arith.constant 0 : index
    %c0_8 = arith.constant 0 : index
    %9 = vector.load %arg3[%c0_6, %c0_7, %c0_8] : memref<4x8x2xf32, #tpu.memory_space<vmem>>, vector<1x8x2xf32>
    %10 = vector.shape_cast %9 : vector<1x8x2xf32> to vector<8x2xf32>
    %cst_9 = arith.constant dense<0.000000e+00> : vector<2x2xf32>
    %11 = tpu.matmul %8, %10, %cst_9 {dimension_numbers = #tpu.dot_dimension_numbers<[1], [0], [0], [1], [0, 0, 1, 1], [], []>} : vector<2x8xf32>, vector<8x2xf32>, vector<2x2xf32> -> vector<2x2xf32>
    %12 = arith.addf %3, %11 : vector<2x2xf32>
    %c0_10 = arith.constant 0 : index
    %c1 = arith.constant 1 : index
    %c0_11 = arith.constant 0 : index
    %c0_12 = arith.constant 0 : index
    %13 = vector.load %arg2[%c0_10, %c1, %c0_11, %c0_12] : memref<2x4x8x64xf32, #tpu.memory_space<vmem>>, vector<2x1x8x64xf32>
    %14 = vector.shape_cast %13 : vector<2x1x8x64xf32> to vector<2x8x64xf32>
    %cst_13 = arith.constant dense<0.000000e+00> : vector<2x8xf32>
    %15 = vector.multi_reduction <add>, %14, %cst_13 [2] : vector<2x8x64xf32> to vector<2x8xf32>
    %cst_14 = arith.constant 1.562500e-02 : f32
    %16 = vector.broadcast %cst_14 : f32 to vector<2x8xf32>
    %17 = arith.mulf %15, %16 : vector<2x8xf32>
    %c1_15 = arith.constant 1 : index
    %c0_16 = arith.constant 0 : index
    %c0_17 = arith.constant 0 : index
    %18 = vector.load %arg3[%c1_15, %c0_16, %c0_17] : memref<4x8x2xf32, #tpu.memory_space<vmem>>, vector<1x8x2xf32>
    %19 = vector.shape_cast %18 : vector<1x8x2xf32> to vector<8x2xf32>
    %cst_18 = arith.constant dense<0.000000e+00> : vector<2x2xf32>
    %20 = tpu.matmul %17, %19, %cst_18 {dimension_numbers = #tpu.dot_dimension_numbers<[1], [0], [0], [1], [0, 0, 1, 1], [], []>} : vector<2x8xf32>, vector<8x2xf32>, vector<2x2xf32> -> vector<2x2xf32>
    %21 = arith.addf %12, %20 : vector<2x2xf32>
    %c0_19 = arith.constant 0 : index
    %c2 = arith.constant 2 : index
    %c0_20 = arith.constant 0 : index
    %c0_21 = arith.constant 0 : index
    %22 = vector.load %arg2[%c0_19, %c2, %c0_20, %c0_21] : memref<2x4x8x64xf32, #tpu.memory_space<vmem>>, vector<2x1x8x64xf32>
    %23 = vector.shape_cast %22 : vector<2x1x8x64xf32> to vector<2x8x64xf32>
    %cst_22 = arith.constant dense<0.000000e+00> : vector<2x8xf32>
    %24 = vector.multi_reduction <add>, %23, %cst_22 [2] : vector<2x8x64xf32> to vector<2x8xf32>
    %cst_23 = arith.constant 1.562500e-02 : f32
    %25 = vector.broadcast %cst_23 : f32 to vector<2x8xf32>
    %26 = arith.mulf %24, %25 : vector<2x8xf32>
    %c2_24 = arith.constant 2 : index
    %c0_25 = arith.constant 0 : index
    %c0_26 = arith.constant 0 : index
    %27 = vector.load %arg3[%c2_24, %c0_25, %c0_26] : memref<4x8x2xf32, #tpu.memory_space<vmem>>, vector<1x8x2xf32>
    %28 = vector.shape_cast %27 : vector<1x8x2xf32> to vector<8x2xf32>
    %cst_27 = arith.constant dense<0.000000e+00> : vector<2x2xf32>
    %29 = tpu.matmul %26, %28, %cst_27 {dimension_numbers = #tpu.dot_dimension_numbers<[1], [0], [0], [1], [0, 0, 1, 1], [], []>} : vector<2x8xf32>, vector<8x2xf32>, vector<2x2xf32> -> vector<2x2xf32>
    %30 = arith.addf %21, %29 : vector<2x2xf32>
    %c0_28 = arith.constant 0 : index
    %c3 = arith.constant 3 : index
    %c0_29 = arith.constant 0 : index
    %c0_30 = arith.constant 0 : index
    %31 = vector.load %arg2[%c0_28, %c3, %c0_29, %c0_30] : memref<2x4x8x64xf32, #tpu.memory_space<vmem>>, vector<2x1x8x64xf32>
    %32 = vector.shape_cast %31 : vector<2x1x8x64xf32> to vector<2x8x64xf32>
    %cst_31 = arith.constant dense<0.000000e+00> : vector<2x8xf32>
    %33 = vector.multi_reduction <add>, %32, %cst_31 [2] : vector<2x8x64xf32> to vector<2x8xf32>
    %cst_32 = arith.constant 1.562500e-02 : f32
    %34 = vector.broadcast %cst_32 : f32 to vector<2x8xf32>
    %35 = arith.mulf %33, %34 : vector<2x8xf32>
    %c3_33 = arith.constant 3 : index
    %c0_34 = arith.constant 0 : index
    %c0_35 = arith.constant 0 : index
    %36 = vector.load %arg3[%c3_33, %c0_34, %c0_35] : memref<4x8x2xf32, #tpu.memory_space<vmem>>, vector<1x8x2xf32>
    %37 = vector.shape_cast %36 : vector<1x8x2xf32> to vector<8x2xf32>
    %cst_36 = arith.constant dense<0.000000e+00> : vector<2x2xf32>
    %38 = tpu.matmul %35, %37, %cst_36 {dimension_numbers = #tpu.dot_dimension_numbers<[1], [0], [0], [1], [0, 0, 1, 1], [], []>} : vector<2x8xf32>, vector<8x2xf32>, vector<2x2xf32> -> vector<2x2xf32>
    %39 = arith.addf %30, %38 : vector<2x2xf32>
    %c0_37 = arith.constant 0 : index
    %c0_38 = arith.constant 0 : index
    %40 = vector.load %arg8[%c0_37, %c0_38] : memref<2x2xf32, #tpu.memory_space<vmem>>, vector<2x2xf32>
    %41 = arith.addf %40, %39 : vector<2x2xf32>
    %c0_39 = arith.constant 0 : index
    %c0_40 = arith.constant 0 : index
    %42 = vector.load %arg8[%c0_39, %c0_40] : memref<2x2xf32, #tpu.memory_space<vmem>>, vector<2x2xf32>
    tpu.vector_store %arg8[%c0_39, %c0_40], %41 {strides = array<i32>} : memref<2x2xf32, #tpu.memory_space<vmem>>, vector<2x2xf32>,
    %c3_i32 = arith.constant 3 : i32
    %43 = arith.cmpi eq, %arg1, %c3_i32 : i32
    %44 = arith.extui %43 : i1 to i32
    %c0_i32_41 = arith.constant 0 : i32
    %45 = arith.cmpi ne, %44, %c0_i32_41 : i32
    scf.if %45 {
      %c0_42 = arith.constant 0 : index
      %c0_43 = arith.constant 0 : index
      %46 = vector.load %arg8[%c0_42, %c0_43] : memref<2x2xf32, #tpu.memory_space<vmem>>, vector<2x2xf32>
      %c0_44 = arith.constant 0 : index
      %c0_45 = arith.constant 0 : index
      %47 = vector.load %arg4[%c0_44, %c0_45] : memref<1x2xf32, #tpu.memory_space<vmem>>, vector<1x2xf32>
      %48 = vector.broadcast %47 : vector<1x2xf32> to vector<2x2xf32>
      %49 = arith.addf %46, %48 : vector<2x2xf32>
      %cst_46 = arith.constant 0.000000e+00 : f32
      %50 = vector.broadcast %cst_46 : f32 to vector<2x2xf32>
      %51 = arith.maximumf %49, %50 : vector<2x2xf32>
      %c0_47 = arith.constant 0 : index
      %c0_48 = arith.constant 0 : index
      %52 = vector.load %arg5[%c0_47, %c0_48] : memref<2x32xf32, #tpu.memory_space<vmem>>, vector<2x32xf32>
      %cst_49 = arith.constant dense<0.000000e+00> : vector<2x32xf32>
      %53 = tpu.matmul %51, %52, %cst_49 {dimension_numbers = #tpu.dot_dimension_numbers<[1], [0], [0], [1], [0, 0, 1, 1], [], []>} : vector<2x2xf32>, vector<2x32xf32>, vector<2x32xf32> -> vector<2x32xf32>
      %c0_50 = arith.constant 0 : index
      %c0_51 = arith.constant 0 : index
      %54 = vector.load %arg6[%c0_50, %c0_51] : memref<1x32xf32, #tpu.memory_space<vmem>>, vector<1x32xf32>
      %55 = vector.broadcast %54 : vector<1x32xf32> to vector<2x32xf32>
      %56 = arith.addf %53, %55 : vector<2x32xf32>
      %57 = arith.negf %56 : vector<2x32xf32>
      %58 = math.exp %57 : vector<2x32xf32>
      %cst_52 = arith.constant 1.000000e+00 : f32
      %59 = vector.broadcast %cst_52 : f32 to vector<2x32xf32>
      %60 = arith.addf %59, %58 : vector<2x32xf32>
      %61 = arith.divf %59, %60 : vector<2x32xf32>
      %c0_53 = arith.constant 0 : index
      %c0_54 = arith.constant 0 : index
      %62 = vector.load %arg7[%c0_53, %c0_54] : memref<2x32xf32, #tpu.memory_space<vmem>>, vector<2x32xf32>
      tpu.vector_store %arg7[%c0_53, %c0_54], %61 {strides = array<i32>} : memref<2x32xf32, #tpu.memory_space<vmem>>, vector<2x32xf32>,
    } else {
    }
    return
  }
  func.func @transform_0(%arg0: i32, %arg1: i32) -> (i32, i32, i32, i32) {
    %c0_i32 = arith.constant 0 : i32
    %c0_i32_0 = arith.constant 0 : i32
    %c0_i32_1 = arith.constant 0 : i32
    return %arg0, %c0_i32, %arg1, %c0_i32_0 : i32, i32, i32, i32
  }
  func.func @transform_1(%arg0: i32, %arg1: i32) -> (i32, i32, i32) {
    %c0_i32 = arith.constant 0 : i32
    %c0_i32_0 = arith.constant 0 : i32
    %c0_i32_1 = arith.constant 0 : i32
    return %c0_i32, %arg1, %c0_i32_0 : i32, i32, i32
  }
  func.func @transform_2(%arg0: i32, %arg1: i32) -> (i32, i32) {
    %c0_i32 = arith.constant 0 : i32
    %c0_i32_0 = arith.constant 0 : i32
    %c0_i32_1 = arith.constant 0 : i32
    return %c0_i32, %c0_i32_0 : i32, i32
  }
  func.func @transform_3(%arg0: i32, %arg1: i32) -> (i32, i32) {
    %c0_i32 = arith.constant 0 : i32
    %c0_i32_0 = arith.constant 0 : i32
    %c0_i32_1 = arith.constant 0 : i32
    return %c0_i32, %c0_i32_0 : i32, i32
  }
  func.func @transform_4(%arg0: i32, %arg1: i32) -> (i32, i32) {
    %c0_i32 = arith.constant 0 : i32
    %c0_i32_0 = arith.constant 0 : i32
    %c0_i32_1 = arith.constant 0 : i32
    return %c0_i32, %c0_i32_0 : i32, i32
  }
  func.func @transform_5(%arg0: i32, %arg1: i32) -> (i32, i32) {
    %c0_i32 = arith.constant 0 : i32
    %c0_i32_0 = arith.constant 0 : i32
    return %arg0, %c0_i32 : i32, i32
  }
}

</mosaic_0001>

<llo_original>
// kernel: tpu_custom_call.1
$region0: #{tpu_custom_call.1}
  #allocation0 [shape = 'u32[]', space=smem, size = 0x4, offset = 0x4, fixed_abs, tag = 'smem constant byte address 0x4 - core index']
  #allocation1 [shape = 'u32[144,128]{1,0:T(1,128)}', space=vmem, size = 0x12000, scoped, tag = 'internal scratch']
  #allocation2 [shape = 'f32[2,2]{1,0:T(2,128)}', space=vmem, size = 0x400, scoped, tag = 'scratch operand']
  %s0 = inlined_call_operand.hbm [shape: f32[2,4,32,64], index: 0, kind: input, shape index: {}]
  %s1 = inlined_call_operand.vmem [shape: f32[4,32,2], index: 1, kind: input, shape index: {}]
  %s2 = inlined_call_operand.vmem [shape: f32[1,2], index: 2, kind: input, shape index: {}]
  %s3 = inlined_call_operand.vmem [shape: f32[2,32], index: 3, kind: input, shape index: {}]
  %s4 = inlined_call_operand.vmem [shape: f32[1,32], index: 4, kind: input, shape index: {}]
  %s5 = inlined_call_operand.hbm [shape: f32[2,32], index: 5, kind: output, shape index: {}]
  %s6 = sld [smem:[#allocation0]]
  $region103: #{tpu_custom_call.1} parent=0
    _
  %s8 = ssub.s32 1, %s6
  %s9 = scalar_select 0, %s8, %s6
  $region1: #{tpu_custom_call.1} parent=0
    #allocation3 [shape = 'u8[65536]{0}', space=vmem, size = 0x10000, scoped, tag = 'input window, operand 0']
    #allocation4 [shape = 's32[2]{0}', space=sflag, size = 0x8, scoped, tag = 'scoped memory for tpu_custom_call.1']
    #allocation5 [shape = 's32[2]{0}', space=sflag, size = 0x8, scoped, tag = 'scoped memory for tpu_custom_call.1']
    #allocation6 [shape = 'u8[32768]{0}', space=vmem, size = 0x8000, scoped, tag = 'input window, operand 1']
    #allocation7 [shape = 'u8[1024]{0}', space=vmem, size = 0x400, scoped, tag = 'output window, operand 0, single buffered']
    %10 = vsyncpa [#allocation4], 0
    %s11 = scalar_lea.sflag [#allocation4], 1
    %12 = vsyncpa %s11, 0
    %13 = vsyncpa [#allocation5], 0
    loop: start=0, step=1, limit=6
    $region2: #{tpu_custom_call.1} parent=1 // loop_pre_header
      _
    $region3: #{tpu_custom_call.1} parent=1 // loop_header
      %s15 = sphi 0, %s19
      %p16 = scmp.ge.s32.totalorder %s15, 6
      %s22 = sphi 0, %s34
      %s23 = sphi 0, %s30
      %s24 = sphi 0, %s22
      %s25 = sphi 0, %s23
      %s26 = sphi 0, %s24
      %s27 = sphi 0, %s25
      %s39 = sphi 0, %s41
      %s42 = sphi 0, %s39
      %s43 = sphi 0, %s42
      %s59 = sphi 0, %s43
      %s65 = sphi 0, %s67
      %s68 = sphi 0, %s65
      %s69 = sphi 0, %s68
      %s85 = sphi 0, %s69
      %s89 = sphi 0, %s89
      %s91 = sphi 0, %s89
      %s92 = sphi 0, %s91
      %s106 = sphi 0, %s92
      %s110 = sphi 0, %s110
      %s112 = sphi 0, %s110
      %s113 = sphi 0, %s112
      %s127 = sphi 0, %s113
      %s131 = sphi 0, %s131
      %s133 = sphi 0, %s131
      %s134 = sphi 0, %s133
      %s148 = sphi 0, %s134
      %s154 = sphi 0, %s156
      %s157 = sphi 0, %s154
      %s158 = sphi 0, %s157
      %s174 = sphi 0, %s158
    $region4: #{tpu_custom_call.1} parent=1 // loop_header_branch
      %18 = sbr.rel (%p16) target = $region8
    $region5: #{tpu_custom_call.1} parent=1 // loop_body
      %s20 = ssub.s32 %s15, 1
      %s21 = ssub.s32 %s15, 2
      %s28 = sadd.s32 1, %s23
      %p29 = scmp.ge.s32.totalorder %s28, 4
      %s30 = scalar_select %p29, 0, %s28
      %s31 = sadd.s32 1, %s22
      %s32 = scalar_select %p29, %s31, %s22
      %p33 = scmp.ge.s32.totalorder %s32, 1
      %s34 = scalar_select %p33, 0, %s32
      %s35 = ssub.s32 %s22, %s34
      %s36 = ssub.s32 %s23, %s30
      %s37 = sor.u32 %s35, %s36
      %p38 = scmp.eq.s32.totalorder %s37, 0
      %s40 = sadd.s32 %s39, 1
      %s41 = scalar_select %p38, %s39, %s40
      %p44 = pneg %p38
      %p45 = scmp.eq.s32.totalorder %s15, 3
      %p46 = por %p44, %p45
      %p47 = scmp.ne.s32.totalorder %s39, %s42
      %p48 = scmp.eq.s32.totalorder %s15, 0
      %p49 = por %p47, %p48
      %p50 = scmp.ne.s32.totalorder %s39, %s42
      %p51 = scmp.eq.s32.totalorder %s20, 3
      %p52 = por %p50, %p51
      %p53 = scmp.ne.s32.totalorder %s42, %s43
      %p54 = scmp.eq.s32.totalorder %s20, 0
      %p55 = por %p53, %p54
      %p56 = scmp.ne.s32.totalorder %s42, %s43
      %p57 = scmp.eq.s32.totalorder %s21, 3
      %p58 = por %p56, %p57
      %p60 = scmp.ne.s32.totalorder %s43, %s59
      %p61 = scmp.eq.s32.totalorder %s21, 0
      %p62 = por %p60, %p61
      %s63 = ssub.s32 %s23, %s30
      %p64 = scmp.eq.s32.totalorder %s63, 0
      %s66 = sadd.s32 %s65, 1
      %s67 = scalar_select %p64, %s65, %s66
      %p70 = pneg %p64
      %p71 = scmp.eq.s32.totalorder %s15, 3
      %p72 = por %p70, %p71
      %p73 = scmp.ne.s32.totalorder %s65, %s68
      %p74 = scmp.eq.s32.totalorder %s15, 0
      %p75 = por %p73, %p74
      %p76 = scmp.ne.s32.totalorder %s65, %s68
      %p77 = scmp.eq.s32.totalorder %s20, 3
      %p78 = por %p76, %p77
      %p79 = scmp.ne.s32.totalorder %s68, %s69
      %p80 = scmp.eq.s32.totalorder %s20, 0
      %p81 = por %p79, %p80
      %p82 = scmp.ne.s32.totalorder %s68, %s69
      %p83 = scmp.eq.s32.totalorder %s21, 3
      %p84 = por %p82, %p83
      %p86 = scmp.ne.s32.totalorder %s69, %s85
      %p87 = scmp.eq.s32.totalorder %s21, 0
      %p88 = por %p86, %p87
      %s90 = sadd.s32 %s89, 1
      %p93 = scmp.eq.s32.totalorder %s15, 3
      %p94 = scmp.ne.s32.totalorder %s89, %s91
      %p95 = scmp.eq.s32.totalorder %s15, 0
      %p96 = por %p94, %p95
      %p97 = scmp.ne.s32.totalorder %s89, %s91
      %p98 = scmp.eq.s32.totalorder %s20, 3
      %p99 = por %p97, %p98
      %p100 = scmp.ne.s32.totalorder %s91, %s92
      %p101 = scmp.eq.s32.totalorder %s20, 0
      %p102 = por %p100, %p101
      %p103 = scmp.ne.s32.totalorder %s91, %s92
      %p104 = scmp.eq.s32.totalorder %s21, 3
      %p105 = por %p103, %p104
      %p107 = scmp.ne.s32.totalorder %s92, %s106
      %p108 = scmp.eq.s32.totalorder %s21, 0
      %p109 = por %p107, %p108
      %s111 = sadd.s32 %s110, 1
      %p114 = scmp.eq.s32.totalorder %s15, 3
      %p115 = scmp.ne.s32.totalorder %s110, %s112
      %p116 = scmp.eq.s32.totalorder %s15, 0
      %p117 = por %p115, %p116
      %p118 = scmp.ne.s32.totalorder %s110, %s112
      %p119 = scmp.eq.s32.totalorder %s20, 3
      %p120 = por %p118, %p119
      %p121 = scmp.ne.s32.totalorder %s112, %s113
      %p122 = scmp.eq.s32.totalorder %s20, 0
      %p123 = por %p121, %p122
      %p124 = scmp.ne.s32.totalorder %s112, %s113
      %p125 = scmp.eq.s32.totalorder %s21, 3
      %p126 = por %p124, %p125
      %p128 = scmp.ne.s32.totalorder %s113, %s127
      %p129 = scmp.eq.s32.totalorder %s21, 0
      %p130 = por %p128, %p129
      %s132 = sadd.s32 %s131, 1
      %p135 = scmp.eq.s32.totalorder %s15, 3
      %p136 = scmp.ne.s32.totalorder %s131, %s133
      %p137 = scmp.eq.s32.totalorder %s15, 0
      %p138 = por %p136, %p137
      %p139 = scmp.ne.s32.totalorder %s131, %s133
      %p140 = scmp.eq.s32.totalorder %s20, 3
      %p141 = por %p139, %p140
      %p142 = scmp.ne.s32.totalorder %s133, %s134
      %p143 = scmp.eq.s32.totalorder %s20, 0
      %p144 = por %p142, %p143
      %p145 = scmp.ne.s32.totalorder %s133, %s134
      %p146 = scmp.eq.s32.totalorder %s21, 3
      %p147 = por %p145, %p146
      %p149 = scmp.ne.s32.totalorder %s134, %s148
      %p150 = scmp.eq.s32.totalorder %s21, 0
      %p151 = por %p149, %p150
      %s152 = ssub.s32 %s22, %s34
      %p153 = scmp.eq.s32.totalorder %s152, 0
      %s155 = sadd.s32 %s154, 1
      %s156 = scalar_select %p153, %s154, %s155
      %p159 = pneg %p153
      %p160 = scmp.eq.s32.totalorder %s15, 3
      %p161 = por %p159, %p160
      %p162 = scmp.ne.s32.totalorder %s154, %s157
      %p163 = scmp.eq.s32.totalorder %s15, 0
      %p164 = por %p162, %p163
      %p165 = scmp.ne.s32.totalorder %s154, %s157
      %p166 = scmp.eq.s32.totalorder %s20, 3
      %p167 = por %p165, %p166
      %p168 = scmp.ne.s32.totalorder %s157, %s158
      %p169 = scmp.eq.s32.totalorder %s20, 0
      %p170 = por %p168, %p169
      %p171 = scmp.ne.s32.totalorder %s157, %s158
      %p172 = scmp.eq.s32.totalorder %s21, 3
      %p173 = por %p171, %p172
      %p175 = scmp.ne.s32.totalorder %s158, %s174
      %p176 = scmp.eq.s32.totalorder %s21, 0
      %p177 = por %p175, %p176
      %p178 = scmp.le.s32.totalorder 1, %s15
      %p179 = scmp.lt.s32.totalorder %s15, 5
      %p180 = pnand %p178, %p179
      %p181 = pneg %p180
      // Predicated region
      $region9: #{tpu_custom_call.1} parent=5 // pred_check
        _
      $region10: #{tpu_custom_call.1} parent=5 // pred_check_branch
        %183 = sbr.rel (%p180) target = $region12
      $region11: #{tpu_custom_call.1} parent=5 // pred_region
        %s184 = ssub.s32 %s15, 1
        // Predicated region
        $region13: #{tpu_custom_call.1} parent=11 // pred_check
          %p185 = pneg %p102
        $region14: #{tpu_custom_call.1} parent=11 // pred_check_branch
          %187 = sbr.rel (%p185) target = $region16
        $region15: #{tpu_custom_call.1} parent=11 // pred_region
          _
        $region16: #{tpu_custom_call.1} parent=11 // pred_fallthru
          _
        // Predicated region
        $region17: #{tpu_custom_call.1} parent=11 // pred_check
          %p188 = pneg %p123
        $region18: #{tpu_custom_call.1} parent=11 // pred_check_branch
          %190 = sbr.rel (%p188) target = $region20
        $region19: #{tpu_custom_call.1} parent=11 // pred_region
          _
        $region20: #{tpu_custom_call.1} parent=11 // pred_fallthru
          _
        // Predicated region
        $region21: #{tpu_custom_call.1} parent=11 // pred_check
          %p191 = pneg %p144
        $region22: #{tpu_custom_call.1} parent=11 // pred_check_branch
          %193 = sbr.rel (%p191) target = $region24
        $region23: #{tpu_custom_call.1} parent=11 // pred_region
          _
        $region24: #{tpu_custom_call.1} parent=11 // pred_fallthru
          _
      $region12: #{tpu_custom_call.1} parent=5 // pred_fallthru
        _
      %p194 = scmp.lt.s32.totalorder %s15, 4
      // Predicated region
      $region25: #{tpu_custom_call.1} parent=5 // pred_check
        %p195 = pneg %p194
      $region26: #{tpu_custom_call.1} parent=5 // pred_check_branch
        %197 = sbr.rel (%p195) target = $region28
      $region27: #{tpu_custom_call.1} parent=5 // pred_region
        // Predicated region
        $region29: #{tpu_custom_call.1} parent=27 // pred_check
          %p198 = pneg %p49
        $region30: #{tpu_custom_call.1} parent=27 // pred_check_branch
          %200 = sbr.rel (%p198) target = $region32
        $region31: #{tpu_custom_call.1} parent=27 // pred_region
          %s201 = sand.u32 %s39, 1
          %s202 = scalar_lea.sflag [#allocation4], %s201
          %s203 = sand.u32 %s39, 1
          %s204 = smul.addr %s203, 64
          %s205 = scalar_lea.vmem [#allocation3], %s204
          %s206 = smul.u32 2, %s22
          %s208 = ssub.s32 1024, 1024
          %209 = vsyncadd %s202, %s208
          %s210 = smul.addr %s206, 16
          %s211 = sadd.s32 %s23, %s210
          %s212 = smul.addr %s211, 128
          %s213 = scalar_lea.hbm %s0, %s212
          %s214 = sshll.u32 %s205, 4
          %s215 = int_to_ptr.vmem [resolvable:$true] %s214
          %220 = dma.hbm_to_vmem [thread:$0]  %s213, 1024, %s215, %s202, 512, 128, 8
        $region32: #{tpu_custom_call.1} parent=27 // pred_fallthru
          _
        // Predicated region
        $region33: #{tpu_custom_call.1} parent=27 // pred_check
          %p221 = pneg %p75
        $region34: #{tpu_custom_call.1} parent=27 // pred_check_branch
          %223 = sbr.rel (%p221) target = $region36
        $region35: #{tpu_custom_call.1} parent=27 // pred_region
          %s224 = sand.u32 %s65, 1
          %s225 = sand.u32 %s65, 1
          %s226 = smul.addr %s225, 32
          %s227 = scalar_lea.vmem [#allocation6], %s226
          %s228 = smul.addr %s23, 8
          %s229 = scalar_lea.vmem %s1, %s228
          // Predicated region
          $region37: #{tpu_custom_call.1} parent=35 // pred_check
            _
          $region38: #{tpu_custom_call.1} parent=35 // pred_check_branch
            %231 = sbr.rel (0) target = $region40
          $region39: #{tpu_custom_call.1} parent=35 // pred_region
            // Predicated region
            $region41: #{tpu_custom_call.1} parent=39 // pred_check
              _
            $region42: #{tpu_custom_call.1} parent=39 // pred_check_branch
              %233 = sbr.rel (0) target = $region44
            $region43: #{tpu_custom_call.1} parent=39 // pred_region
              // Predicated region
              $region56: #{tpu_custom_call.1} parent=43 // pred_check
                _
              $region57: #{tpu_custom_call.1} parent=43 // pred_check_branch
                %254 = sbr.rel (0) target = $region59
              $region58: #{tpu_custom_call.1} parent=43 // pred_region
                loop: start=0, step=1, limit=1
                $region60: #{tpu_custom_call.1} parent=58 // loop_pre_header
                  _
                $region61: #{tpu_custom_call.1} parent=58 // loop_header
                  %s256 = sphi 0, %s260
                  %p257 = scmp.ge.s32.totalorder %s256, 1
                  %s261 = sphi %s229, %s229
                  %s262 = sphi %s227, %s227
                $region62: #{tpu_custom_call.1} parent=58 // loop_header_branch
                  %259 = sbr.rel (%p257) target = $region66
                $region63: #{tpu_custom_call.1} parent=58 // loop_body
                  %v263 = vld [vmem:[%s261] sm:$0xff]
                  %264 = vst [vmem:[%s262] sm:$0xff] %v263
                  %v265 = vld [vmem:[%s261 + $0x20] sm:$0xff]
                  %266 = vst [vmem:[%s262 + $0x8] sm:$0xff] %v265
                  %v267 = vld [vmem:[%s261 + $0x40] sm:$0xff]
                  %268 = vst [vmem:[%s262 + $0x10] sm:$0xff] %v267
                  %v269 = vld [vmem:[%s261 + $0x60] sm:$0xff]
                  %270 = vst [vmem:[%s262 + $0x18] sm:$0xff] %v269
                $region64: #{tpu_custom_call.1} parent=58 // loop_footer
                  %s260 = sadd.s32 1, %s256
                $region65: #{tpu_custom_call.1} parent=58 // loop_footer_branch
                  %255 = sbr.rel target = $region61
                $region66: #{tpu_custom_call.1} parent=58 // loop_exit
                  _
              $region59: #{tpu_custom_call.1} parent=43 // pred_fallthru
                _
              // Predicated region
              $region67: #{tpu_custom_call.1} parent=43 // pred_check
                _
              $region68: #{tpu_custom_call.1} parent=43 // pred_check_branch
                %272 = sbr.rel target = $region70
              $region69: #{tpu_custom_call.1} parent=43 // pred_region
                _
              $region70: #{tpu_custom_call.1} parent=43 // pred_fallthru
                _
            $region44: #{tpu_custom_call.1} parent=39 // pred_fallthru
              _
            // Predicated region
            $region45: #{tpu_custom_call.1} parent=39 // pred_check
              _
            $region46: #{tpu_custom_call.1} parent=39 // pred_check_branch
              %235 = sbr.rel target = $region48
            $region47: #{tpu_custom_call.1} parent=39 // pred_region
              loop: start=0, step=1, limit=1
              $region49: #{tpu_custom_call.1} parent=47 // loop_pre_header
                _
              $region50: #{tpu_custom_call.1} parent=47 // loop_header
                %s238 = sphi 0, %s242
                %p239 = scmp.ge.s32.totalorder %s238, 1
                %s243 = sphi %s229, %s229
                %s244 = sphi %s227, %s227
              $region51: #{tpu_custom_call.1} parent=47 // loop_header_branch
                %241 = sbr.rel (%p239) target = $region55
              $region52: #{tpu_custom_call.1} parent=47 // loop_body
                %v245 = vld [vmem:[%s243] sm:$0xff]
                %246 = vst [vmem:[%s244] sm:$0xff] %v245
                %v247 = vld [vmem:[%s243 + $0x20] sm:$0xff]
                %248 = vst [vmem:[%s244 + $0x8] sm:$0xff] %v247
                %v249 = vld [vmem:[%s243 + $0x40] sm:$0xff]
                %250 = vst [vmem:[%s244 + $0x10] sm:$0xff] %v249
                %v251 = vld [vmem:[%s243 + $0x60] sm:$0xff]
                %252 = vst [vmem:[%s244 + $0x18] sm:$0xff] %v251
              $region53: #{tpu_custom_call.1} parent=47 // loop_footer
                %s242 = sadd.s32 1, %s238
              $region54: #{tpu_custom_call.1} parent=47 // loop_footer_branch
                %237 = sbr.rel target = $region50
              $region55: #{tpu_custom_call.1} parent=47 // loop_exit
                _
            $region48: #{tpu_custom_call.1} parent=39 // pred_fallthru
              _
          $region40: #{tpu_custom_call.1} parent=35 // pred_fallthru
            _
          %273 = vnop
        $region36: #{tpu_custom_call.1} parent=27 // pred_fallthru
          _
      $region28: #{tpu_custom_call.1} parent=5 // pred_fallthru
        _
      %p274 = scmp.le.s32.totalorder 1, %s15
      %p275 = scmp.lt.s32.totalorder %s15, 5
      %p276 = pnand %p274, %p275
      %p277 = pneg %p276
      // Predicated region
      $region71: #{tpu_custom_call.1} parent=5 // pred_check
        _
      $region72: #{tpu_custom_call.1} parent=5 // pred_check_branch
        %279 = sbr.rel (%p276) target = $region74
      $region73: #{tpu_custom_call.1} parent=5 // pred_region
        %s280 = ssub.s32 %s15, 1
        %s281 = sand.u32 %s42, 1
        %s282 = scalar_lea.sflag [#allocation4], %s281
        %s283 = sand.u32 %s42, 1
        %s284 = smul.addr %s283, 64
        %s285 = scalar_lea.vmem [#allocation3], %s284
        // Predicated region
        $region75: #{tpu_custom_call.1} parent=73 // pred_check
          %p286 = pneg %p55
        $region76: #{tpu_custom_call.1} parent=73 // pred_check_branch
          %288 = sbr.rel (%p286) target = $region78
        $region77: #{tpu_custom_call.1} parent=73 // pred_region
          %289 = dma.done %s282, 1024
        $region78: #{tpu_custom_call.1} parent=73 // pred_fallthru
          _
        %s290 = sand.u32 %s68, 1
        %s291 = sand.u32 %s68, 1
        %s292 = smul.addr %s291, 32
        %s293 = scalar_lea.vmem [#allocation6], %s292
        // Predicated region
        $region79: #{tpu_custom_call.1} parent=73 // pred_check
          %p294 = pneg %p81
        $region80: #{tpu_custom_call.1} parent=73 // pred_check_branch
          %296 = sbr.rel (%p294) target = $region82
        $region81: #{tpu_custom_call.1} parent=73 // pred_region
          _
        $region82: #{tpu_custom_call.1} parent=73 // pred_fallthru
          _
        %s297 = sand.u32 %s42, 1
        %s298 = scalar_lea.sflag [#allocation4], %s297
        %s299 = sand.u32 %s42, 1
        %s300 = smul.addr %s299, 64
        %s301 = scalar_lea.vmem [#allocation3], %s300
        %p302 = pneg %p55
        %p303 = pneg %p52
        %s304 = sand.u32 %s68, 1
        %s305 = sand.u32 %s68, 1
        %s306 = smul.addr %s305, 32
        %s307 = scalar_lea.vmem [#allocation6], %s306
        %p308 = pneg %p81
        %p309 = pneg %p78
        %p310 = pneg %p102
        %p311 = pneg %p99
        %p312 = pneg %p123
        %p313 = pneg %p120
        %p314 = pneg %p144
        %p315 = pneg %p141
        %p316 = pneg %p170
        %p317 = pneg %p167
        %s318 = smul.u32 2, %s24
        %p319 = scmp.eq.s32.totalorder %s25, 0
        // Predicated region
        $region83: #{tpu_custom_call.1} parent=73 // pred_check
          %p320 = pneg %p319
        $region84: #{tpu_custom_call.1} parent=73 // pred_check_branch
          %322 = sbr.rel (%p320) target = $region86
        $region85: #{tpu_custom_call.1} parent=73 // pred_region
          %vm323 = vcmask 9216
          %324 = vst.msk [vmem:[#allocation2] sm:$0x3] %vm323, 0.0
        $region86: #{tpu_custom_call.1} parent=73 // pred_fallthru
          _
        %v325 = vld [vmem:[%s285] sm:$0xff]
        %v326 = vld [vmem:[%s285 + $0x20] sm:$0xff]
        %vm327 = vcmask 523264
        %v328 = vsel %vm327, %v325, 0.0
        %329 = vadd.xlane.f32.xlu0 %v328
        %v330 = vpop.xlane.xlu0 %329
        %v331 = vsel %vm327, %v326, 0.0
        %332 = vadd.xlane.f32.xlu0 %v331
        %v333 = vpop.xlane.xlu0 %332
        %v334 = vmul.f32 %v330, 0.015625
        %v335 = vmul.f32 %v333, 0.015625
        %v336 = vld [vmem:[%s293] sm:$0xff]
        %s337 = scalar_lea.vmem %s285, 8 [#allocation3]
        %v338 = vld [vmem:[%s337] sm:$0xff]
        %v339 = vld [vmem:[%s337 + $0x20] sm:$0xff]
        %v340 = vsel %vm327, %v338, 0.0
        %341 = vadd.xlane.f32.xlu0 %v340
        %v342 = vpop.xlane.xlu0 %341
        %v343 = vsel %vm327, %v339, 0.0
        %344 = vadd.xlane.f32.xlu0 %v343
        %v345 = vpop.xlane.xlu0 %344
        %v346 = vmul.f32 %v342, 0.015625
        %v347 = vmul.f32 %v345, 0.015625
        %s348 = scalar_lea.vmem %s293, 8 [#allocation6]
        %v349 = vld [vmem:[%s348] sm:$0xff]
        %v352 = vlaneseq
        %v353 = vand.u32 %v352, 127
        %v354 = vlaneseq
        %v355 = vshrl.u32 %v354, 7
        %v356 = vsub.s32 %v353, %v355
        %v357 = vrot.slane %v346, %v356
        %v358 = vlaneseq
        %v359 = vshrl.u32 %v358, 7
        %v360 = vsub.s32 %v353, %v359
        %v361 = vrot.slane %v347, %v360
        %vm362 = vcmask 1041409
        %v363 = vsel %vm362, %v361, %v357
        %vm364 = vcmask 64512
        %v365 = vsel %vm364, %v363, 0
        %367 = vmatprep.subr.mxu0 0.0
        %368 = vmatpush1.msra.mxu0 %v349
        %369 = vmatprep.subr.mxu0 0.0
        %370 = vmatpush1.msra.mxu0 0.0
        %371 = vmatprep.subr.mxu0 0.0
        %372 = vmatpush1.msra.mxu0 0.0
        %373 = vmatprep.subr.mxu0 0.0
        %374 = vmatpush1.msra.mxu0 0.0
        %375 = vmatprep.subr.mxu0 0.0
        %376 = vmatpush1.msra.mxu0 0.0
        %377 = vmatprep.subr.mxu0 0.0
        %378 = vmatpush1.msra.mxu0 0.0
        %379 = vmatprep.subr.mxu0 0.0
        %380 = vmatpush1.msra.mxu0 0.0
        %381 = vmatprep.subr.mxu0 0.0
        %382 = vmatpush1.msra.mxu0 0.0
        %383 = vmatprep.subr.mxu0 0.0
        %384 = vmatpush1.msra.mxu0 0.0
        %385 = vmatprep.subr.mxu0 0.0
        %386 = vmatpush1.msra.mxu0 0.0
        %387 = vmatprep.subr.mxu0 0.0
        %388 = vmatpush1.msra.mxu0 0.0
        %389 = vmatprep.subr.mxu0 0.0
        %390 = vmatpush1.msra.mxu0 0.0
        %391 = vmatprep.subr.mxu0 0.0
        %392 = vmatpush1.msra.mxu0 0.0
        %393 = vmatprep.subr.mxu0 0.0
        %394 = vmatpush1.msra.mxu0 0.0
        %395 = vmatprep.subr.mxu0 0.0
        %396 = vmatpush1.msra.mxu0 0.0
        %397 = vmatprep.subr.mxu0 0.0
        %398 = vmatpush1.msra.mxu0 0.0
        %399 = vmatprep.subr.mxu0 0.0
        %400 = vmatpush1.msra.mxu0 0.0
        %401 = vmatprep.subr.mxu0 0.0
        %402 = vmatpush1.msra.mxu0 0.0
        %403 = vmatprep.subr.mxu0 0.0
        %404 = vmatpush1.msra.mxu0 0.0
        %405 = vmatprep.subr.mxu0 0.0
        %406 = vmatpush1.msra.mxu0 0.0
        %407 = vmatprep.subr.mxu0 0.0
        %408 = vmatpush1.msra.mxu0 0.0
        %409 = vmatprep.subr.mxu0 0.0
        %410 = vmatpush1.msra.mxu0 0.0
        %411 = vmatprep.subr.mxu0 0.0
        %412 = vmatpush1.msra.mxu0 0.0
        %413 = vmatprep.subr.mxu0 0.0
        %414 = vmatpush1.msra.mxu0 0.0
        %415 = vmatprep.subr.mxu0 0.0
        %416 = vmatpush1.msra.mxu0 0.0
        %417 = vmatprep.subr.mxu0 0.0
        %418 = vmatpush1.msra.mxu0 0.0
        %419 = vmatprep.subr.mxu0 0.0
        %420 = vmatpush1.msra.mxu0 0.0
        %421 = vmatprep.subr.mxu0 0.0
        %422 = vmatpush1.msra.mxu0 0.0
        %423 = vmatprep.subr.mxu0 0.0
        %424 = vmatpush1.msra.mxu0 0.0
        %425 = vmatprep.subr.mxu0 0.0
        %426 = vmatpush1.msra.mxu0 0.0
        %427 = vmatprep.subr.mxu0 0.0
        %428 = vmatpush1.msra.mxu0 0.0
        %429 = vmatprep.subr.mxu0 0.0
        %430 = vmatpush1.msra.mxu0 0.0
        %431 = vmatprep.mubr.f32.mxu0 0.0
        %432 = vmatmul.mubr.f32.gmra.mrb[0].mxu0 %v365
        %v433 = vpop.f32.mrb[0].mxu0
        %v434 = vadd.f32 0.0, %v433
        %v435 = vpop.f32.mrb[0].mxu0
        %436 = vdwg.mxu0
        %v439 = vlaneseq
        %v440 = vshrl.u32 %v439, 7
        %v441 = vsub.s32 %v353, %v440
        %v442 = vrot.slane %v334, %v441
        %v443 = vlaneseq
        %v444 = vshrl.u32 %v443, 7
        %v445 = vsub.s32 %v353, %v444
        %v446 = vrot.slane %v335, %v445
        %v447 = vsel %vm362, %v446, %v442
        %v448 = vsel %vm364, %v447, 0
        %450 = vmatprep.subr.mxu0 0.0
        %451 = vmatpush1.msra.mxu0 %v336
        %452 = vmatprep.subr.mxu0 0.0
        %453 = vmatpush1.msra.mxu0 0.0
        %454 = vmatprep.subr.mxu0 0.0
        %455 = vmatpush1.msra.mxu0 0.0
        %456 = vmatprep.subr.mxu0 0.0
        %457 = vmatpush1.msra.mxu0 0.0
        %458 = vmatprep.subr.mxu0 0.0
        %459 = vmatpush1.msra.mxu0 0.0
        %460 = vmatprep.subr.mxu0 0.0
        %461 = vmatpush1.msra.mxu0 0.0
        %462 = vmatprep.subr.mxu0 0.0
        %463 = vmatpush1.msra.mxu0 0.0
        %464 = vmatprep.subr.mxu0 0.0
        %465 = vmatpush1.msra.mxu0 0.0
        %466 = vmatprep.subr.mxu0 0.0
        %467 = vmatpush1.msra.mxu0 0.0
        %468 = vmatprep.subr.mxu0 0.0
        %469 = vmatpush1.msra.mxu0 0.0
        %470 = vmatprep.subr.mxu0 0.0
        %471 = vmatpush1.msra.mxu0 0.0
        %472 = vmatprep.subr.mxu0 0.0
        %473 = vmatpush1.msra.mxu0 0.0
        %474 = vmatprep.subr.mxu0 0.0
        %475 = vmatpush1.msra.mxu0 0.0
        %476 = vmatprep.subr.mxu0 0.0
        %477 = vmatpush1.msra.mxu0 0.0
        %478 = vmatprep.subr.mxu0 0.0
        %479 = vmatpush1.msra.mxu0 0.0
        %480 = vmatprep.subr.mxu0 0.0
        %481 = vmatpush1.msra.mxu0 0.0
        %482 = vmatprep.subr.mxu0 0.0
        %483 = vmatpush1.msra.mxu0 0.0
        %484 = vmatprep.subr.mxu0 0.0
        %485 = vmatpush1.msra.mxu0 0.0
        %486 = vmatprep.subr.mxu0 0.0
        %487 = vmatpush1.msra.mxu0 0.0
        %488 = vmatprep.subr.mxu0 0.0
        %489 = vmatpush1.msra.mxu0 0.0
        %490 = vmatprep.subr.mxu0 0.0
        %491 = vmatpush1.msra.mxu0 0.0
        %492 = vmatprep.subr.mxu0 0.0
        %493 = vmatpush1.msra.mxu0 0.0
        %494 = vmatprep.subr.mxu0 0.0
        %495 = vmatpush1.msra.mxu0 0.0
        %496 = vmatprep.subr.mxu0 0.0
        %497 = vmatpush1.msra.mxu0 0.0
        %498 = vmatprep.subr.mxu0 0.0
        %499 = vmatpush1.msra.mxu0 0.0
        %500 = vmatprep.subr.mxu0 0.0
        %501 = vmatpush1.msra.mxu0 0.0
        %502 = vmatprep.subr.mxu0 0.0
        %503 = vmatpush1.msra.mxu0 0.0
        %504 = vmatprep.subr.mxu0 0.0
        %505 = vmatpush1.msra.mxu0 0.0
        %506 = vmatprep.subr.mxu0 0.0
        %507 = vmatpush1.msra.mxu0 0.0
        %508 = vmatprep.subr.mxu0 0.0
        %509 = vmatpush1.msra.mxu0 0.0
        %510 = vmatprep.subr.mxu0 0.0
        %511 = vmatpush1.msra.mxu0 0.0
        %512 = vmatprep.subr.mxu0 0.0
        %513 = vmatpush1.msra.mxu0 0.0
        %514 = vmatprep.mubr.f32.mxu0 0.0
        %515 = vmatmul.mubr.f32.gmra.mrb[0].mxu0 %v448
        %v516 = vpop.f32.mrb[0].mxu0
        %v517 = vadd.f32 %v434, %v516
        %v518 = vpop.f32.mrb[0].mxu0
        %519 = vdwg.mxu0
        %s520 = scalar_lea.vmem %s285, 16 [#allocation3]
        %v521 = vld [vmem:[%s520] sm:$0xff]
        %v522 = vld [vmem:[%s520 + $0x20] sm:$0xff]
        %v523 = vsel %vm327, %v521, 0.0
        %524 = vadd.xlane.f32.xlu0 %v523
        %v525 = vpop.xlane.xlu0 %524
        %v526 = vsel %vm327, %v522, 0.0
        %527 = vadd.xlane.f32.xlu0 %v526
        %v528 = vpop.xlane.xlu0 %527
        %v529 = vmul.f32 %v525, 0.015625
        %v530 = vmul.f32 %v528, 0.015625
        %s531 = scalar_lea.vmem %s293, 16 [#allocation6]
        %v532 = vld [vmem:[%s531] sm:$0xff]
        %v535 = vlaneseq
        %v536 = vshrl.u32 %v535, 7
        %v537 = vsub.s32 %v353, %v536
        %v538 = vrot.slane %v529, %v537
        %v539 = vlaneseq
        %v540 = vshrl.u32 %v539, 7
        %v541 = vsub.s32 %v353, %v540
        %v542 = vrot.slane %v530, %v541
        %v543 = vsel %vm362, %v542, %v538
        %v544 = vsel %vm364, %v543, 0
        %546 = vmatprep.subr.mxu0 0.0
        %547 = vmatpush1.msra.mxu0 %v532
        %548 = vmatprep.subr.mxu0 0.0
        %549 = vmatpush1.msra.mxu0 0.0
        %550 = vmatprep.subr.mxu0 0.0
        %551 = vmatpush1.msra.mxu0 0.0
        %552 = vmatprep.subr.mxu0 0.0
        %553 = vmatpush1.msra.mxu0 0.0
        %554 = vmatprep.subr.mxu0 0.0
        %555 = vmatpush1.msra.mxu0 0.0
        %556 = vmatprep.subr.mxu0 0.0
        %557 = vmatpush1.msra.mxu0 0.0
        %558 = vmatprep.subr.mxu0 0.0
        %559 = vmatpush1.msra.mxu0 0.0
        %560 = vmatprep.subr.mxu0 0.0
        %561 = vmatpush1.msra.mxu0 0.0
        %562 = vmatprep.subr.mxu0 0.0
        %563 = vmatpush1.msra.mxu0 0.0
        %564 = vmatprep.subr.mxu0 0.0
        %565 = vmatpush1.msra.mxu0 0.0
        %566 = vmatprep.subr.mxu0 0.0
        %567 = vmatpush1.msra.mxu0 0.0
        %568 = vmatprep.subr.mxu0 0.0
        %569 = vmatpush1.msra.mxu0 0.0
        %570 = vmatprep.subr.mxu0 0.0
        %571 = vmatpush1.msra.mxu0 0.0
        %572 = vmatprep.subr.mxu0 0.0
        %573 = vmatpush1.msra.mxu0 0.0
        %574 = vmatprep.subr.mxu0 0.0
        %575 = vmatpush1.msra.mxu0 0.0
        %576 = vmatprep.subr.mxu0 0.0
        %577 = vmatpush1.msra.mxu0 0.0
        %578 = vmatprep.subr.mxu0 0.0
        %579 = vmatpush1.msra.mxu0 0.0
        %580 = vmatprep.subr.mxu0 0.0
        %581 = vmatpush1.msra.mxu0 0.0
        %582 = vmatprep.subr.mxu0 0.0
        %583 = vmatpush1.msra.mxu0 0.0
        %584 = vmatprep.subr.mxu0 0.0
        %585 = vmatpush1.msra.mxu0 0.0
        %586 = vmatprep.subr.mxu0 0.0
        %587 = vmatpush1.msra.mxu0 0.0
        %588 = vmatprep.subr.mxu0 0.0
        %589 = vmatpush1.msra.mxu0 0.0
        %590 = vmatprep.subr.mxu0 0.0
        %591 = vmatpush1.msra.mxu0 0.0
        %592 = vmatprep.subr.mxu0 0.0
        %593 = vmatpush1.msra.mxu0 0.0
        %594 = vmatprep.subr.mxu0 0.0
        %595 = vmatpush1.msra.mxu0 0.0
        %596 = vmatprep.subr.mxu0 0.0
        %597 = vmatpush1.msra.mxu0 0.0
        %598 = vmatprep.subr.mxu0 0.0
        %599 = vmatpush1.msra.mxu0 0.0
        %600 = vmatprep.subr.mxu0 0.0
        %601 = vmatpush1.msra.mxu0 0.0
        %602 = vmatprep.subr.mxu0 0.0
        %603 = vmatpush1.msra.mxu0 0.0
        %604 = vmatprep.subr.mxu0 0.0
        %605 = vmatpush1.msra.mxu0 0.0
        %606 = vmatprep.subr.mxu0 0.0
        %607 = vmatpush1.msra.mxu0 0.0
        %608 = vmatprep.subr.mxu0 0.0
        %609 = vmatpush1.msra.mxu0 0.0
        %610 = vmatprep.mubr.f32.mxu0 0.0
        %611 = vmatmul.mubr.f32.gmra.mrb[0].mxu0 %v544
        %v612 = vpop.f32.mrb[0].mxu0
        %v613 = vadd.f32 0.0, %v612
        %v614 = vpop.f32.mrb[0].mxu0
        %615 = vdwg.mxu0
        %v616 = vadd.f32 %v517, %v613
        %s617 = scalar_lea.vmem %s285, 24 [#allocation3]
        %v618 = vld [vmem:[%s617] sm:$0xff]
        %v619 = vld [vmem:[%s617 + $0x20] sm:$0xff]
        %v620 = vsel %vm327, %v618, 0.0
        %621 = vadd.xlane.f32.xlu0 %v620
        %v622 = vpop.xlane.xlu0 %621
        %v623 = vsel %vm327, %v619, 0.0
        %624 = vadd.xlane.f32.xlu0 %v623
        %v625 = vpop.xlane.xlu0 %624
        %v626 = vmul.f32 %v622, 0.015625
        %v627 = vmul.f32 %v625, 0.015625
        %s628 = scalar_lea.vmem %s293, 24 [#allocation6]
        %v629 = vld [vmem:[%s628] sm:$0xff]
        %v632 = vlaneseq
        %v633 = vshrl.u32 %v632, 7
        %v634 = vsub.s32 %v353, %v633
        %v635 = vrot.slane %v626, %v634
        %v636 = vlaneseq
        %v637 = vshrl.u32 %v636, 7
        %v638 = vsub.s32 %v353, %v637
        %v639 = vrot.slane %v627, %v638
        %v640 = vsel %vm362, %v639, %v635
        %v641 = vsel %vm364, %v640, 0
        %643 = vmatprep.subr.mxu0 0.0
        %644 = vmatpush1.msra.mxu0 %v629
        %645 = vmatprep.subr.mxu0 0.0
        %646 = vmatpush1.msra.mxu0 0.0
        %647 = vmatprep.subr.mxu0 0.0
        %648 = vmatpush1.msra.mxu0 0.0
        %649 = vmatprep.subr.mxu0 0.0
        %650 = vmatpush1.msra.mxu0 0.0
        %651 = vmatprep.subr.mxu0 0.0
        %652 = vmatpush1.msra.mxu0 0.0
        %653 = vmatprep.subr.mxu0 0.0
        %654 = vmatpush1.msra.mxu0 0.0
        %655 = vmatprep.subr.mxu0 0.0
        %656 = vmatpush1.msra.mxu0 0.0
        %657 = vmatprep.subr.mxu0 0.0
        %658 = vmatpush1.msra.mxu0 0.0
        %659 = vmatprep.subr.mxu0 0.0
        %660 = vmatpush1.msra.mxu0 0.0
        %661 = vmatprep.subr.mxu0 0.0
        %662 = vmatpush1.msra.mxu0 0.0
        %663 = vmatprep.subr.mxu0 0.0
        %664 = vmatpush1.msra.mxu0 0.0
        %665 = vmatprep.subr.mxu0 0.0
        %666 = vmatpush1.msra.mxu0 0.0
        %667 = vmatprep.subr.mxu0 0.0
        %668 = vmatpush1.msra.mxu0 0.0
        %669 = vmatprep.subr.mxu0 0.0
        %670 = vmatpush1.msra.mxu0 0.0
        %671 = vmatprep.subr.mxu0 0.0
        %672 = vmatpush1.msra.mxu0 0.0
        %673 = vmatprep.subr.mxu0 0.0
        %674 = vmatpush1.msra.mxu0 0.0
        %675 = vmatprep.subr.mxu0 0.0
        %676 = vmatpush1.msra.mxu0 0.0
        %677 = vmatprep.subr.mxu0 0.0
        %678 = vmatpush1.msra.mxu0 0.0
        %679 = vmatprep.subr.mxu0 0.0
        %680 = vmatpush1.msra.mxu0 0.0
        %681 = vmatprep.subr.mxu0 0.0
        %682 = vmatpush1.msra.mxu0 0.0
        %683 = vmatprep.subr.mxu0 0.0
        %684 = vmatpush1.msra.mxu0 0.0
        %685 = vmatprep.subr.mxu0 0.0
        %686 = vmatpush1.msra.mxu0 0.0
        %687 = vmatprep.subr.mxu0 0.0
        %688 = vmatpush1.msra.mxu0 0.0
        %689 = vmatprep.subr.mxu0 0.0
        %690 = vmatpush1.msra.mxu0 0.0
        %691 = vmatprep.subr.mxu0 0.0
        %692 = vmatpush1.msra.mxu0 0.0
        %693 = vmatprep.subr.mxu0 0.0
        %694 = vmatpush1.msra.mxu0 0.0
        %695 = vmatprep.subr.mxu0 0.0
        %696 = vmatpush1.msra.mxu0 0.0
        %697 = vmatprep.subr.mxu0 0.0
        %698 = vmatpush1.msra.mxu0 0.0
        %699 = vmatprep.subr.mxu0 0.0
        %700 = vmatpush1.msra.mxu0 0.0
        %701 = vmatprep.subr.mxu0 0.0
        %702 = vmatpush1.msra.mxu0 0.0
        %703 = vmatprep.subr.mxu0 0.0
        %704 = vmatpush1.msra.mxu0 0.0
        %705 = vmatprep.subr.mxu0 0.0
        %706 = vmatpush1.msra.mxu0 0.0
        %707 = vmatprep.mubr.f32.mxu0 0.0
        %708 = vmatmul.mubr.f32.gmra.mrb[0].mxu0 %v641
        %v709 = vpop.f32.mrb[0].mxu0
        %v710 = vadd.f32 0.0, %v709
        %v711 = vpop.f32.mrb[0].mxu0
        %712 = vdwg.mxu0
        %v713 = vadd.f32 %v616, %v710
        %v714 = vld [vmem:[#allocation2] sm:$0x3]
        %v715 = vadd.f32 %v714, %v713
        %vm716 = vcmask 9216
        %717 = vst.msk [vmem:[#allocation2] sm:$0x3] %vm716, %v715
        %p718 = scmp.eq.s32.totalorder %s25, 3
        // Predicated region
        $region87: #{tpu_custom_call.1} parent=73 // pred_check
          %p719 = pneg %p718
        $region88: #{tpu_custom_call.1} parent=73 // pred_check_branch
          %721 = sbr.rel (%p719) target = $region90
        $region89: #{tpu_custom_call.1} parent=73 // pred_region
          %v722 = vld [vmem:[#allocation2] sm:$0x3]
          %v723 = vld [vmem:[%s2] sm:$0x1]
          %v725 = vlaneseq
          %v726 = vshrl.u32 %v725, 7
          %v727 = vsub.s32 0, %v726
          %v728 = vrot.slane %v723, %v727
          %v730 = vadd.f32 %v722, %v728
          %v731 = vmax.f32 %v730, 0.0
          %v732 = vld [vmem:[%s3] sm:$0x3]
          %v733 = vld [vmem:[%s4] sm:$0x1]
          %v735 = vlaneseq
          %v736 = vshrl.u32 %v735, 7
          %v737 = vsub.s32 0, %v736
          %v738 = vrot.slane %v733, %v737
          %vm740 = vcmask 15360
          %v742 = vsel %vm740, %v731, 0
          %vm744 = vcmask 1041408
          %v746 = vsel %vm744, %v732, 0
          %748 = vmatprep.subr.mxu0 0.0
          %749 = vmatpush1.msra.mxu0 %v746
          %750 = vmatprep.subr.mxu0 0.0
          %751 = vmatpush1.msra.mxu0 0.0
          %752 = vmatprep.subr.mxu0 0.0
          %753 = vmatpush1.msra.mxu0 0.0
          %754 = vmatprep.subr.mxu0 0.0
          %755 = vmatpush1.msra.mxu0 0.0
          %756 = vmatprep.subr.mxu0 0.0
          %757 = vmatpush1.msra.mxu0 0.0
          %758 = vmatprep.subr.mxu0 0.0
          %759 = vmatpush1.msra.mxu0 0.0
          %760 = vmatprep.subr.mxu0 0.0
          %761 = vmatpush1.msra.mxu0 0.0
          %762 = vmatprep.subr.mxu0 0.0
          %763 = vmatpush1.msra.mxu0 0.0
          %764 = vmatprep.subr.mxu0 0.0
          %765 = vmatpush1.msra.mxu0 0.0
          %766 = vmatprep.subr.mxu0 0.0
          %767 = vmatpush1.msra.mxu0 0.0
          %768 = vmatprep.subr.mxu0 0.0
          %769 = vmatpush1.msra.mxu0 0.0
          %770 = vmatprep.subr.mxu0 0.0
          %771 = vmatpush1.msra.mxu0 0.0
          %772 = vmatprep.subr.mxu0 0.0
          %773 = vmatpush1.msra.mxu0 0.0
          %774 = vmatprep.subr.mxu0 0.0
          %775 = vmatpush1.msra.mxu0 0.0
          %776 = vmatprep.subr.mxu0 0.0
          %777 = vmatpush1.msra.mxu0 0.0
          %778 = vmatprep.subr.mxu0 0.0
          %779 = vmatpush1.msra.mxu0 0.0
          %780 = vmatprep.subr.mxu0 0.0
          %781 = vmatpush1.msra.mxu0 0.0
          %782 = vmatprep.subr.mxu0 0.0
          %783 = vmatpush1.msra.mxu0 0.0
          %784 = vmatprep.subr.mxu0 0.0
          %785 = vmatpush1.msra.mxu0 0.0
          %786 = vmatprep.subr.mxu0 0.0
          %787 = vmatpush1.msra.mxu0 0.0
          %788 = vmatprep.subr.mxu0 0.0
          %789 = vmatpush1.msra.mxu0 0.0
          %790 = vmatprep.subr.mxu0 0.0
          %791 = vmatpush1.msra.mxu0 0.0
          %792 = vmatprep.subr.mxu0 0.0
          %793 = vmatpush1.msra.mxu0 0.0
          %794 = vmatprep.subr.mxu0 0.0
          %795 = vmatpush1.msra.mxu0 0.0
          %796 = vmatprep.subr.mxu0 0.0
          %797 = vmatpush1.msra.mxu0 0.0
          %798 = vmatprep.subr.mxu0 0.0
          %799 = vmatpush1.msra.mxu0 0.0
          %800 = vmatprep.subr.mxu0 0.0
          %801 = vmatpush1.msra.mxu0 0.0
          %802 = vmatprep.subr.mxu0 0.0
          %803 = vmatpush1.msra.mxu0 0.0
          %804 = vmatprep.subr.mxu0 0.0
          %805 = vmatpush1.msra.mxu0 0.0
          %806 = vmatprep.subr.mxu0 0.0
          %807 = vmatpush1.msra.mxu0 0.0
          %808 = vmatprep.subr.mxu0 0.0
          %809 = vmatpush1.msra.mxu0 0.0
          %810 = vmatprep.subr.mxu0 0.0
          %811 = vmatpush1.msra.mxu0 0.0
          %812 = vmatprep.mubr.f32.mxu0 0.0
          %813 = vmatmul.mubr.f32.gmra.mrb[0].mxu0 %v742
          %v814 = vpop.f32.mrb[0].mxu0
          %v815 = vadd.f32 %v738, %v814
          %v816 = vpop.f32.mrb[0].mxu0
          %817 = vdwg.mxu0
          %v818 = vxor.u32 %v815, 2147483648
          %v819 = vmul.f32 %v818, 1.442695
          %v820 = vpow.pop %v819
          %v821 = vadd.f32 %v820, 1.0
          %v822 = vrcp.pop %v821
          %v823 = vmul.f32 1.0, %v822
          %vm824 = vcmask 254976
          %825 = vst.msk [vmem:[#allocation7] sm:$0x3] %vm824, %v823
        $region90: #{tpu_custom_call.1} parent=73 // pred_fallthru
          _
        // Predicated region
        $region91: #{tpu_custom_call.1} parent=73 // pred_check
          %p826 = pneg %p167
        $region92: #{tpu_custom_call.1} parent=73 // pred_check_branch
          %828 = sbr.rel (%p826) target = $region94
        $region93: #{tpu_custom_call.1} parent=73 // pred_region
          %s830 = ssub.s32 32, 32
          %831 = vsyncadd [#allocation5], %s830
          %s832 = smul.addr %s24, 32
          %s833 = scalar_lea.hbm %s5, %s832
          %s835 = sshll.u32 [#allocation7], 4
          %s836 = int_to_ptr.vmem [resolvable:$true] %s835
          %838 = dma.vmem_to_hbm [thread:$0]  %s836, 32, %s833, [#allocation5]
        $region94: #{tpu_custom_call.1} parent=73 // pred_fallthru
          _
        // Predicated region
        $region95: #{tpu_custom_call.1} parent=73 // pred_check
          %p839 = pneg %p167
        $region96: #{tpu_custom_call.1} parent=73 // pred_check_branch
          %841 = sbr.rel (%p839) target = $region98
        $region97: #{tpu_custom_call.1} parent=73 // pred_region
          %842 = dma.done [#allocation5], 32
        $region98: #{tpu_custom_call.1} parent=73 // pred_fallthru
          _
      $region74: #{tpu_custom_call.1} parent=5 // pred_fallthru
        _
      %p843 = scmp.le.s32.totalorder 2, %s15
      // Predicated region
      $region99: #{tpu_custom_call.1} parent=5 // pred_check
        %p844 = pneg %p843
      $region100: #{tpu_custom_call.1} parent=5 // pred_check_branch
        %846 = sbr.rel (%p844) target = $region102
      $region101: #{tpu_custom_call.1} parent=5 // pred_region
        %s847 = ssub.s32 %s15, 2
      $region102: #{tpu_custom_call.1} parent=5 // pred_fallthru
        _
    $region6: #{tpu_custom_call.1} parent=1 // loop_footer
      %s19 = sadd.s32 1, %s15
    $region7: #{tpu_custom_call.1} parent=1 // loop_footer_branch
      %14 = sbr.rel target = $region3
    $region8: #{tpu_custom_call.1} parent=1 // loop_exit
      _
    %848 = vsyncpa [#allocation4], 1
    %s849 = scalar_lea.sflag [#allocation4], 1
    %850 = vsyncpa %s849, 1
    %851 = vsyncpa [#allocation5], 1
    %s852 = scalar_lea.sflag [#allocation5], 1
    %853 = vsyncpa %s852, 1

</llo_original>
